<compile_context>
chip_gen: v5e
topology: v5e:2x2
jax: 0.10.0
libtpu: 0.0.40
codegen_flags: <defaults>
</compile_context>

<pallas_src>
import jax
import jax.numpy as jnp
from jax.experimental import pallas as pl
from jax.experimental.pallas import tpu as pltpu


# ----------------------------------------------------------------------------
# Generic tiled matmul kernel: o = act(a @ b [+ bias]), bf16 operands, f32 acc.
# ----------------------------------------------------------------------------
def _apply_act(y, activation):
    if activation == "relu":
        return jnp.maximum(y, 0.0)
    if activation == "tanh":
        return jnp.tanh(y)
    return y


def _make_matmul_kernel(activation, has_bias, nk):
    def kernel(*refs):
        if has_bias:
            a_ref, b_ref, bias_ref = refs[:3]
            rest = refs[3:]
        else:
            a_ref, b_ref = refs[:2]
            bias_ref = None
            rest = refs[2:]

        if nk == 1:
            # Single K step: no accumulator scratch, no pl.when.
            (o_ref,) = rest
            y = jnp.dot(a_ref[...], b_ref[...], preferred_element_type=jnp.float32)
            if bias_ref is not None:
                y = y + bias_ref[...].astype(jnp.float32)
            o_ref[...] = _apply_act(y, activation).astype(o_ref.dtype)
        else:
            # Fallback path for large K (not used for this module's shapes).
            o_ref, acc_ref = rest
            k = pl.program_id(2)

            @pl.when(k == 0)
            def _():
                acc_ref[...] = jnp.zeros_like(acc_ref)

            acc_ref[...] += jnp.dot(a_ref[...], b_ref[...],
                                    preferred_element_type=jnp.float32)

            @pl.when(k == nk - 1)
            def _():
                y = acc_ref[...]
                if bias_ref is not None:
                    y = y + bias_ref[...].astype(jnp.float32)
                o_ref[...] = _apply_act(y, activation).astype(o_ref.dtype)

    return kernel


def _pick_tile(dim, align, target):
    """Largest tile <= target dividing `dim`, multiple of `align`; else full dim."""
    if dim % align != 0:
        return dim
    t = max(align, (min(target, dim) // align) * align)
    while dim % t != 0:
        t -= align
    return t


def matmul_act(a, b, bias=None, activation="none", out_dtype=None,
               tm_target=512, tn_target=512, tk_target=1024):
    """act(a @ b + bias): a [M,K], b [K,N] (bf16), bias [1,N] f32 or None."""
    M, K = a.shape
    K2, N = b.shape
    assert K == K2
    out_dtype = out_dtype or a.dtype

    tm = _pick_tile(M, 8, tm_target)
    tn = _pick_tile(N, 128, tn_target)
    # Prefer >= 2 grid tiles on a parallel axis (v7x shards parallel axes over 2 TCs).
    if (M // tm) * (N // tn) == 1:
        if N % 128 == 0 and tn >= 256:
            tn = _pick_tile(N, 128, tn // 2)
        elif M % 8 == 0 and tm >= 16:
            tm = _pick_tile(M, 8, tm // 2)

    if K % 128 != 0 or K <= tk_target:
        tk, nk = K, 1
    else:
        tk = _pick_tile(K, 128, tk_target)
        nk = K // tk

    has_bias = bias is not None
    kernel = _make_matmul_kernel(activation, has_bias, nk)
    operands = (a, b, bias) if has_bias else (a, b)

    if nk == 1:
        grid = (M // tm, N // tn)
        in_specs = [pl.BlockSpec((tm, K), lambda i, j: (i, 0)),
                    pl.BlockSpec((K, tn), lambda i, j: (0, j))]
        if has_bias:
            in_specs.append(pl.BlockSpec((1, tn), lambda i, j: (0, j)))
        out_specs = pl.BlockSpec((tm, tn), lambda i, j: (i, j))
        scratch = []
        dims = ("parallel", "parallel")
    else:
        grid = (M // tm, N // tn, nk)
        in_specs = [pl.BlockSpec((tm, tk), lambda i, j, k: (i, k)),
                    pl.BlockSpec((tk, tn), lambda i, j, k: (k, j))]
        if has_bias:
            in_specs.append(pl.BlockSpec((1, tn), lambda i, j, k: (0, j)))
        out_specs = pl.BlockSpec((tm, tn), lambda i, j, k: (i, j))
        scratch = [pltpu.VMEM((tm, tn), jnp.float32)]
        dims = ("parallel", "parallel", "arbitrary")

    return pl.pallas_call(
        kernel,
        out_shape=jax.ShapeDtypeStruct((M, N), out_dtype),
        grid_spec=pltpu.PrefetchScalarGridSpec(
            num_scalar_prefetch=0,
            grid=grid,
            in_specs=in_specs,
            out_specs=out_specs,
            scratch_shapes=scratch),
        compiler_params=pltpu.CompilerParams(dimension_semantics=dims),
    )(*operands)


# ----------------------------------------------------------------------------
# ConvTranspose2d(k=4, s=2, p=1, bias=False) [+ ReLU] via one 16-tap matmul
# and an XLA overlap-add / parity interleave.
# ----------------------------------------------------------------------------
_KMAP = ((3, 1), (2, 0))  # [output parity][input offset] -> kernel tap index


def conv_transpose4x4_s2(x_nhwc, w16, c_out, apply_relu=True):
    """x_nhwc: [B, H, W, Cin] bf16;  w16: [Cin, 16*Cout] bf16 (taps (ky,kx) on N axis).
    Returns [B, 2H, 2W, Cout] bf16."""
    B, H, W_, Ci = x_nhwc.shape
    # One lane-dense matmul for all 16 taps: y[m, ky, kx, co] = sum_ci x * W[ci,co,ky,kx].
    y = matmul_act(x_nhwc.reshape(B * H * W_, Ci), w16)
    y = y.reshape(B, H, W_, 4, 4, c_out)
    yp = jnp.pad(y, ((0, 0), (1, 1), (1, 1), (0, 0), (0, 0), (0, 0)))

    # Overlap-add: out[n, 2p+s, 2q+t, co] =
    #   sum_{a,b} y[n, p+s+a-1, q+t+b-1, KMAP[s][a], KMAP[t][b], co]
    phase = [[None, None], [None, None]]
    for s in (0, 1):
        for t in (0, 1):
            acc = None
            for a in (0, 1):
                for b in (0, 1):
                    c = yp[:, s + a:s + a + H, t + b:t + b + W_,
                           _KMAP[s][a], _KMAP[t][b], :]
                    acc = c if acc is None else acc + c
            phase[s][t] = jnp.maximum(acc, 0) if apply_relu else acc

    # Parity interleave -> [B, 2H, 2W, Cout]  (pure layout plumbing, fused by XLA).
    row0 = jnp.stack((phase[0][0], phase[0][1]), axis=3)   # [B, H, W, 2, Co]
    row1 = jnp.stack((phase[1][0], phase[1][1]), axis=3)
    out = jnp.stack((row0, row1), axis=2)                   # [B, H, 2, W, 2, Co]
    return out.reshape(B, 2 * H, 2 * W_, c_out)


# ----------------------------------------------------------------------------
# Full generate_img forward (Pallas path).
# ----------------------------------------------------------------------------
def generate_img_forward(x_nchw, convt_weights, final_w, final_b):
    """x_nchw: [B, 512, H, W] f32; convt_weights: torch-layout [Cin, Cout, 4, 4];
    final_w: [3, 64, 1, 1]; final_b: [3].  Returns NCHW f32."""
    x = jnp.transpose(x_nchw, (0, 2, 3, 1)).astype(jnp.bfloat16)
    for w in convt_weights:
        ci, co = int(w.shape[0]), int(w.shape[1])
        w16 = jnp.transpose(w, (0, 2, 3, 1)).reshape(ci, 16 * co).astype(jnp.bfloat16)
        x = conv_transpose4x4_s2(x, w16, co, apply_relu=True)

    B, Hf, Wf, C = x.shape
    n_out = final_w.shape[0]
    # 1x1 conv + bias + tanh; output channels zero-padded 3 -> 128 for lane-dense
    # stores, sliced back afterwards (tanh(0) = 0 in the padded lanes).
    n_pad = 128
    w1 = jnp.zeros((C, n_pad), jnp.bfloat16).at[:, :n_out].set(
        jnp.transpose(final_w.reshape(n_out, C)).astype(jnp.bfloat16))
    b1 = jnp.zeros((1, n_pad), jnp.float32).at[0, :n_out].set(
        final_b.astype(jnp.float32))
    y = matmul_act(x.reshape(B * Hf * Wf, C), w1, bias=b1, activation="tanh",
                   out_dtype=jnp.float32)
    y = y[:, :n_out].reshape(B, Hf, Wf, n_out)
    return jnp.transpose(y, (0, 3, 1, 2))  # NCHW


# ----------------------------------------------------------------------------
# Pure-JAX f32 reference (lax dilated conv == PyTorch ConvTranspose2d semantics).
# ----------------------------------------------------------------------------
def _convT_ref(x_nhwc, w):
    wk = jnp.transpose(w[:, :, ::-1, ::-1], (2, 3, 0, 1))  # HWIO, spatially flipped
    return jax.lax.conv_general_dilated(
        x_nhwc, wk, window_strides=(1, 1), padding=[(2, 2), (2, 2)],
        lhs_dilation=(2, 2), dimension_numbers=("NHWC", "HWIO", "NHWC"))


def generate_img_ref(x_nchw, convt_weights, final_w, final_b):
    x = jnp.transpose(x_nchw, (0, 2, 3, 1))
    for w in convt_weights:
        x = jax.nn.relu(_convT_ref(x, w))
    y = jnp.einsum("nhwc,oc->nhwo", x, final_w.reshape(final_w.shape[0], -1)) + final_b
    return jnp.transpose(jnp.tanh(y), (0, 3, 1, 2))


if __name__ == "__main__":
    key = jax.random.PRNGKey(0)
    keys = jax.random.split(key, 8)

    # Small shapes consistent with the module: start=512 channels, decoder ends at 64.
    channels = (256, 128, 64)
    B, H0, W0 = 2, 2, 2
    x = jax.random.normal(keys[0], (B, 512, H0, W0), dtype=jnp.float32)

    convt_ws, cin = [], 512
    for idx, cout in enumerate(channels):
        w = 0.05 * jax.random.normal(keys[idx + 1], (cin, cout, 4, 4), jnp.float32)
        convt_ws.append(w)
        cin = cout
    final_w = 0.3 * jax.random.normal(keys[5], (3, 64, 1, 1), jnp.float32)
    final_b = 0.1 * jax.random.normal(keys[6], (3,), jnp.float32)

    out = jax.block_until_ready(generate_img_forward(x, convt_ws, final_w, final_b))

    # Reference built from the SAME bf16-quantized parameters/input, so the check
    # isolates kernel correctness from the intentional bf16 carry of activations.
    x_q = x.astype(jnp.bfloat16).astype(jnp.float32)
    ws_q = [w.astype(jnp.bfloat16).astype(jnp.float32) for w in convt_ws]
    fw_q = final_w.astype(jnp.bfloat16).astype(jnp.float32)
    ref = jax.block_until_ready(generate_img_ref(x_q, ws_q, fw_q, final_b))

    Hf = H0 * 2 ** len(channels)
    assert out.shape == (B, 3, Hf, Hf), out.shape
    rel_err = float(jnp.linalg.norm(out - ref) / jnp.linalg.norm(ref))
    max_err = float(jnp.max(jnp.abs(out - ref)))
    assert rel_err < 5e-2 and max_err < 1e-1, (rel_err, max_err)

    print("KERNEL_OK")
</pallas_src>

<mosaic_0001>
module attributes {stable_mosaic.version = 11 : i64} {
  func.func @kernel(%arg0: i32, %arg1: i32, %arg2: memref<8x512xbf16, #tpu.memory_space<vmem>>, %arg3: memref<512x512xbf16, #tpu.memory_space<vmem>>, %arg4: memref<8x512xbf16, #tpu.memory_space<vmem>>) attributes {dimension_semantics = [#tpu.dimension_semantics<parallel>, #tpu.dimension_semantics<parallel>], iteration_bounds = array<i64: 1, 8>, scalar_prefetch = 0 : i64, scratch_operands = 0 : i64, tpu.core_type = #tpu.core_type<tc>, window_params = [{transform_indices = @transform_0, window_bounds = array<i64: 8, 512>}, {transform_indices = @transform_1, window_bounds = array<i64: 512, 512>}, {transform_indices = @transform_2, window_bounds = array<i64: 8, 512>}]} {
    %c0 = arith.constant 0 : index
    %c0_0 = arith.constant 0 : index
    %0 = vector.load %arg2[%c0, %c0_0] : memref<8x512xbf16, #tpu.memory_space<vmem>>, vector<8x512xbf16>
    %c0_1 = arith.constant 0 : index
    %c0_2 = arith.constant 0 : index
    %1 = vector.load %arg3[%c0_1, %c0_2] : memref<512x512xbf16, #tpu.memory_space<vmem>>, vector<512x512xbf16>
    %cst = arith.constant dense<0.000000e+00> : vector<8x512xf32>
    %2 = tpu.matmul %0, %1, %cst {dimension_numbers = #tpu.dot_dimension_numbers<[1], [0], [0], [1], [0, 0, 1, 1], [], []>} : vector<8x512xbf16>, vector<512x512xbf16>, vector<8x512xf32> -> vector<8x512xf32>
    %3 = arith.truncf %2 : vector<8x512xf32> to vector<8x512xbf16>
    %c0_3 = arith.constant 0 : index
    %c0_4 = arith.constant 0 : index
    %4 = vector.load %arg4[%c0_3, %c0_4] : memref<8x512xbf16, #tpu.memory_space<vmem>>, vector<8x512xbf16>
    tpu.vector_store %arg4[%c0_3, %c0_4], %3 {strides = array<i32>} : memref<8x512xbf16, #tpu.memory_space<vmem>>, vector<8x512xbf16>,
    return
  }
  func.func @transform_0(%arg0: i32, %arg1: i32) -> (i32, i32) {
    %c0_i32 = arith.constant 0 : i32
    %c0_i32_0 = arith.constant 0 : i32
    return %arg0, %c0_i32 : i32, i32
  }
  func.func @transform_1(%arg0: i32, %arg1: i32) -> (i32, i32) {
    %c0_i32 = arith.constant 0 : i32
    %c0_i32_0 = arith.constant 0 : i32
    return %c0_i32, %arg1 : i32, i32
  }
  func.func @transform_2(%arg0: i32, %arg1: i32) -> (i32, i32) {
    %c0_i32 = arith.constant 0 : i32
    return %arg0, %arg1 : i32, i32
  }
}

</mosaic_0001>

<llo_original>
// kernel: tpu_custom_call.1
$region0: #{tpu_custom_call.1}
  #allocation0 [shape = 'u32[]', space=smem, size = 0x4, offset = 0x4, fixed_abs, tag = 'smem constant byte address 0x4 - core index']
  #allocation1 [shape = 'u32[72,128]{1,0:T(1,128)}', space=vmem, size = 0x9000, scoped, tag = 'internal scratch']
  %s0 = inlined_call_operand.hbm [shape: bf16[8,512], index: 0, kind: input, shape index: {}]
  %s1 = inlined_call_operand.hbm [shape: bf16[512,4096], index: 1, kind: input, shape index: {}]
  %s2 = inlined_call_operand.hbm [shape: bf16[8,4096], index: 2, kind: output, shape index: {}]
  %s3 = sld [smem:[#allocation0]]
  $region49: #{tpu_custom_call.1} parent=0
    _
  %s5 = ssub.s32 1, %s3
  %s6 = scalar_select 0, %s5, %s3
  $region1: #{tpu_custom_call.1} parent=0
    #allocation2 [shape = 'u8[8192]{0}', space=vmem, size = 0x2000, scoped, tag = 'input window, operand 0, single buffered']
    #allocation3 [shape = 's32[2]{0}', space=sflag, size = 0x8, scoped, tag = 'scoped memory for tpu_custom_call.1']
    #allocation4 [shape = 's32[2]{0}', space=sflag, size = 0x8, scoped, tag = 'scoped memory for tpu_custom_call.1']
    #allocation5 [shape = 'u8[1048576]{0}', space=vmem, size = 0x100000, scoped, tag = 'input window, operand 1']
    #allocation6 [shape = 's32[2]{0}', space=sflag, size = 0x8, scoped, tag = 'scoped memory for tpu_custom_call.1']
    #allocation7 [shape = 'u8[16384]{0}', space=vmem, size = 0x4000, scoped, tag = 'output window, operand 0']
    %7 = vsyncpa [#allocation3], 0
    %8 = vsyncpa [#allocation6], 0
    %s9 = scalar_lea.sflag [#allocation6], 1
    %10 = vsyncpa %s9, 0
    %11 = vsyncpa [#allocation4], 0
    %s12 = scalar_lea.sflag [#allocation4], 1
    %13 = vsyncpa %s12, 0
    loop: start=0, step=1, limit=10
    $region2: #{tpu_custom_call.1} parent=1 // loop_pre_header
      _
    $region3: #{tpu_custom_call.1} parent=1 // loop_header
      %s15 = sphi 0, %s19
      %p16 = scmp.ge.s32.totalorder %s15, 10
      %s22 = sphi 0, %s34
      %s23 = sphi 0, %s30
      %s24 = sphi 0, %s22
      %s25 = sphi 0, %s23
      %s26 = sphi 0, %s24
      %s27 = sphi 0, %s25
      %s37 = sphi 0, %s39
      %s40 = sphi 0, %s37
      %s41 = sphi 0, %s40
      %s57 = sphi 0, %s41
      %s63 = sphi 0, %s65
      %s66 = sphi 0, %s63
      %s67 = sphi 0, %s66
      %s83 = sphi 0, %s67
      %s91 = sphi 0, %s93
      %s94 = sphi 0, %s91
      %s95 = sphi 0, %s94
      %s111 = sphi 0, %s95
    $region4: #{tpu_custom_call.1} parent=1 // loop_header_branch
      %18 = sbr.rel (%p16) target = $region8
    $region5: #{tpu_custom_call.1} parent=1 // loop_body
      %s20 = ssub.s32 %s15, 1
      %s21 = ssub.s32 %s15, 2
      %s28 = sadd.s32 1, %s23
      %p29 = scmp.ge.s32.totalorder %s28, 8
      %s30 = scalar_select %p29, 0, %s28
      %s31 = sadd.s32 1, %s22
      %s32 = scalar_select %p29, %s31, %s22
      %p33 = scmp.ge.s32.totalorder %s32, 1
      %s34 = scalar_select %p33, 0, %s32
      %s35 = ssub.s32 %s22, %s34
      %p36 = scmp.eq.s32.totalorder %s35, 0
      %s38 = sadd.s32 %s37, 1
      %s39 = scalar_select %p36, %s37, %s38
      %p42 = pneg %p36
      %p43 = scmp.eq.s32.totalorder %s15, 7
      %p44 = por %p42, %p43
      %p45 = scmp.ne.s32.totalorder %s37, %s40
      %p46 = scmp.eq.s32.totalorder %s15, 0
      %p47 = por %p45, %p46
      %p48 = scmp.ne.s32.totalorder %s37, %s40
      %p49 = scmp.eq.s32.totalorder %s20, 7
      %p50 = por %p48, %p49
      %p51 = scmp.ne.s32.totalorder %s40, %s41
      %p52 = scmp.eq.s32.totalorder %s20, 0
      %p53 = por %p51, %p52
      %p54 = scmp.ne.s32.totalorder %s40, %s41
      %p55 = scmp.eq.s32.totalorder %s21, 7
      %p56 = por %p54, %p55
      %p58 = scmp.ne.s32.totalorder %s41, %s57
      %p59 = scmp.eq.s32.totalorder %s21, 0
      %p60 = por %p58, %p59
      %s61 = ssub.s32 %s23, %s30
      %p62 = scmp.eq.s32.totalorder %s61, 0
      %s64 = sadd.s32 %s63, 1
      %s65 = scalar_select %p62, %s63, %s64
      %p68 = pneg %p62
      %p69 = scmp.eq.s32.totalorder %s15, 7
      %p70 = por %p68, %p69
      %p71 = scmp.ne.s32.totalorder %s63, %s66
      %p72 = scmp.eq.s32.totalorder %s15, 0
      %p73 = por %p71, %p72
      %p74 = scmp.ne.s32.totalorder %s63, %s66
      %p75 = scmp.eq.s32.totalorder %s20, 7
      %p76 = por %p74, %p75
      %p77 = scmp.ne.s32.totalorder %s66, %s67
      %p78 = scmp.eq.s32.totalorder %s20, 0
      %p79 = por %p77, %p78
      %p80 = scmp.ne.s32.totalorder %s66, %s67
      %p81 = scmp.eq.s32.totalorder %s21, 7
      %p82 = por %p80, %p81
      %p84 = scmp.ne.s32.totalorder %s67, %s83
      %p85 = scmp.eq.s32.totalorder %s21, 0
      %p86 = por %p84, %p85
      %s87 = ssub.s32 %s22, %s34
      %s88 = ssub.s32 %s23, %s30
      %s89 = sor.u32 %s87, %s88
      %p90 = scmp.eq.s32.totalorder %s89, 0
      %s92 = sadd.s32 %s91, 1
      %s93 = scalar_select %p90, %s91, %s92
      %p96 = pneg %p90
      %p97 = scmp.eq.s32.totalorder %s15, 7
      %p98 = por %p96, %p97
      %p99 = scmp.ne.s32.totalorder %s91, %s94
      %p100 = scmp.eq.s32.totalorder %s15, 0
      %p101 = por %p99, %p100
      %p102 = scmp.ne.s32.totalorder %s91, %s94
      %p103 = scmp.eq.s32.totalorder %s20, 7
      %p104 = por %p102, %p103
      %p105 = scmp.ne.s32.totalorder %s94, %s95
      %p106 = scmp.eq.s32.totalorder %s20, 0
      %p107 = por %p105, %p106
      %p108 = scmp.ne.s32.totalorder %s94, %s95
      %p109 = scmp.eq.s32.totalorder %s21, 7
      %p110 = por %p108, %p109
      %p112 = scmp.ne.s32.totalorder %s95, %s111
      %p113 = scmp.eq.s32.totalorder %s21, 0
      %p114 = por %p112, %p113
      %p115 = scmp.le.s32.totalorder 1, %s15
      %p116 = scmp.lt.s32.totalorder %s15, 9
      %p117 = pnand %p115, %p116
      %p118 = pneg %p117
      // Predicated region
      $region9: #{tpu_custom_call.1} parent=5 // pred_check
        _
      $region10: #{tpu_custom_call.1} parent=5 // pred_check_branch
        %120 = sbr.rel (%p117) target = $region12
      $region11: #{tpu_custom_call.1} parent=5 // pred_region
        %s121 = ssub.s32 %s15, 1
        // Predicated region
        $region13: #{tpu_custom_call.1} parent=11 // pred_check
          %p122 = pneg %p53
        $region14: #{tpu_custom_call.1} parent=11 // pred_check_branch
          %124 = sbr.rel (%p122) target = $region16
        $region15: #{tpu_custom_call.1} parent=11 // pred_region
          %126 = vsyncadd [#allocation3], 0
          %s127 = smul.addr %s24, 4
          %s128 = smul.addr %s127, 4
          %s129 = scalar_lea.hbm %s0, %s128
          %s131 = sshll.u32 %s129, 4
          %s132 = int_to_ptr.hbm [resolvable:$true] %s131
          %s133 = sshll.u32 [#allocation2], 4
          %s134 = int_to_ptr.vmem [resolvable:$true] %s133
          %136 = dma.hbm_to_vmem [thread:$0]  %s132, 256, %s134, [#allocation3]
        $region16: #{tpu_custom_call.1} parent=11 // pred_fallthru
          _
      $region12: #{tpu_custom_call.1} parent=5 // pred_fallthru
        _
      %p137 = scmp.lt.s32.totalorder %s15, 8
      // Predicated region
      $region17: #{tpu_custom_call.1} parent=5 // pred_check
        %p138 = pneg %p137
      $region18: #{tpu_custom_call.1} parent=5 // pred_check_branch
        %140 = sbr.rel (%p138) target = $region20
      $region19: #{tpu_custom_call.1} parent=5 // pred_region
        // Predicated region
        $region21: #{tpu_custom_call.1} parent=19 // pred_check
          %p141 = pneg %p73
        $region22: #{tpu_custom_call.1} parent=19 // pred_check_branch
          %143 = sbr.rel (%p141) target = $region24
        $region23: #{tpu_custom_call.1} parent=19 // pred_region
          %s144 = sand.u32 %s63, 1
          %s145 = scalar_lea.sflag [#allocation6], %s144
          %s146 = sand.u32 %s63, 1
          %s147 = smul.addr %s146, 1024
          %s148 = scalar_lea.vmem [#allocation5], %s147
          %s149 = smul.u32 4, %s23
          %151 = vsyncadd %s145, 0
          %s152 = smul.addr %s149, 4
          %s153 = scalar_lea.hbm %s1, %s152
          %s154 = sshll.u32 %s153, 4
          %s155 = int_to_ptr.hbm [resolvable:$true] %s154
          %s156 = sshll.u32 %s148, 4
          %s157 = int_to_ptr.vmem [resolvable:$true] %s156
          %162 = dma.hbm_to_vmem [thread:$0]  %s155, 16384, %s157, %s145, 2048, 256, 16
        $region24: #{tpu_custom_call.1} parent=19 // pred_fallthru
          _
      $region20: #{tpu_custom_call.1} parent=5 // pred_fallthru
        _
      %p163 = scmp.le.s32.totalorder 1, %s15
      %p164 = scmp.lt.s32.totalorder %s15, 9
      %p165 = pnand %p163, %p164
      %p166 = pneg %p165
      // Predicated region
      $region25: #{tpu_custom_call.1} parent=5 // pred_check
        _
      $region26: #{tpu_custom_call.1} parent=5 // pred_check_branch
        %168 = sbr.rel (%p165) target = $region28
      $region27: #{tpu_custom_call.1} parent=5 // pred_region
        %s169 = ssub.s32 %s15, 1
        // Predicated region
        $region29: #{tpu_custom_call.1} parent=27 // pred_check
          %p170 = pneg %p53
        $region30: #{tpu_custom_call.1} parent=27 // pred_check_branch
          %172 = sbr.rel (%p170) target = $region32
        $region31: #{tpu_custom_call.1} parent=27 // pred_region
          %174 = dma.done [#allocation3], 256
        $region32: #{tpu_custom_call.1} parent=27 // pred_fallthru
          _
        %s175 = sand.u32 %s66, 1
        %s176 = scalar_lea.sflag [#allocation6], %s175
        %s177 = sand.u32 %s66, 1
        %s178 = smul.addr %s177, 1024
        %s179 = scalar_lea.vmem [#allocation5], %s178
        // Predicated region
        $region33: #{tpu_custom_call.1} parent=27 // pred_check
          %p180 = pneg %p79
        $region34: #{tpu_custom_call.1} parent=27 // pred_check_branch
          %182 = sbr.rel (%p180) target = $region36
        $region35: #{tpu_custom_call.1} parent=27 // pred_region
          %184 = dma.done %s176, 16384
        $region36: #{tpu_custom_call.1} parent=27 // pred_fallthru
          _
        %p185 = pneg %p53
        %p186 = pneg %p50
        %s187 = sand.u32 %s66, 1
        %s188 = scalar_lea.sflag [#allocation6], %s187
        %s189 = sand.u32 %s66, 1
        %s190 = smul.addr %s189, 1024
        %s191 = scalar_lea.vmem [#allocation5], %s190
        %p192 = pneg %p79
        %p193 = pneg %p76
        %p194 = pneg %p107
        %p195 = pneg %p104
        %s196 = sand.u32 %s94, 1
        %s197 = scalar_lea.sflag [#allocation4], %s196
        %s198 = sand.u32 %s94, 1
        %s199 = smul.addr %s198, 16
        %s200 = scalar_lea.vmem [#allocation7], %s199
        %s201 = smul.u32 4, %s25
        %s202 = smul.u32 4, %s25
        %v203 = vld [vmem:[#allocation2] sm:$0xff]
        %v204 = vld [vmem:[#allocation2 + $0x8] sm:$0xff]
        %v205 = vld [vmem:[%s179] sm:$0xff]
        %v206 = vld [vmem:[%s179 + $0x8] sm:$0xff]
        %v207 = vld [vmem:[%s179 + $0x10] sm:$0xff]
        %v208 = vld [vmem:[%s179 + $0x18] sm:$0xff]
        %v209 = vld [vmem:[%s179 + $0x20] sm:$0xff]
        %v210 = vld [vmem:[%s179 + $0x28] sm:$0xff]
        %v211 = vld [vmem:[%s179 + $0x30] sm:$0xff]
        %v212 = vld [vmem:[%s179 + $0x38] sm:$0xff]
        %v213 = vld [vmem:[%s179 + $0x40] sm:$0xff]
        %v214 = vld [vmem:[%s179 + $0x48] sm:$0xff]
        %v215 = vld [vmem:[%s179 + $0x50] sm:$0xff]
        %v216 = vld [vmem:[%s179 + $0x58] sm:$0xff]
        %v217 = vld [vmem:[%s179 + $0x60] sm:$0xff]
        %v218 = vld [vmem:[%s179 + $0x68] sm:$0xff]
        %v219 = vld [vmem:[%s179 + $0x70] sm:$0xff]
        %v220 = vld [vmem:[%s179 + $0x78] sm:$0xff]
        %v221 = vld [vmem:[%s179 + $0x80] sm:$0xff]
        %v222 = vld [vmem:[%s179 + $0x88] sm:$0xff]
        %v223 = vld [vmem:[%s179 + $0x90] sm:$0xff]
        %v224 = vld [vmem:[%s179 + $0x98] sm:$0xff]
        %v225 = vld [vmem:[%s179 + $0xa0] sm:$0xff]
        %v226 = vld [vmem:[%s179 + $0xa8] sm:$0xff]
        %v227 = vld [vmem:[%s179 + $0xb0] sm:$0xff]
        %v228 = vld [vmem:[%s179 + $0xb8] sm:$0xff]
        %v229 = vld [vmem:[%s179 + $0xc0] sm:$0xff]
        %v230 = vld [vmem:[%s179 + $0xc8] sm:$0xff]
        %v231 = vld [vmem:[%s179 + $0xd0] sm:$0xff]
        %v232 = vld [vmem:[%s179 + $0xd8] sm:$0xff]
        %v233 = vld [vmem:[%s179 + $0xe0] sm:$0xff]
        %v234 = vld [vmem:[%s179 + $0xe8] sm:$0xff]
        %v235 = vld [vmem:[%s179 + $0xf0] sm:$0xff]
        %v236 = vld [vmem:[%s179 + $0xf8] sm:$0xff]
        %v237 = vld [vmem:[%s179 + $0x100] sm:$0xff]
        %v238 = vld [vmem:[%s179 + $0x108] sm:$0xff]
        %v239 = vld [vmem:[%s179 + $0x110] sm:$0xff]
        %v240 = vld [vmem:[%s179 + $0x118] sm:$0xff]
        %v241 = vld [vmem:[%s179 + $0x120] sm:$0xff]
        %v242 = vld [vmem:[%s179 + $0x128] sm:$0xff]
        %v243 = vld [vmem:[%s179 + $0x130] sm:$0xff]
        %v244 = vld [vmem:[%s179 + $0x138] sm:$0xff]
        %v245 = vld [vmem:[%s179 + $0x140] sm:$0xff]
        %v246 = vld [vmem:[%s179 + $0x148] sm:$0xff]
        %v247 = vld [vmem:[%s179 + $0x150] sm:$0xff]
        %v248 = vld [vmem:[%s179 + $0x158] sm:$0xff]
        %v249 = vld [vmem:[%s179 + $0x160] sm:$0xff]
        %v250 = vld [vmem:[%s179 + $0x168] sm:$0xff]
        %v251 = vld [vmem:[%s179 + $0x170] sm:$0xff]
        %v252 = vld [vmem:[%s179 + $0x178] sm:$0xff]
        %v253 = vld [vmem:[%s179 + $0x180] sm:$0xff]
        %v254 = vld [vmem:[%s179 + $0x188] sm:$0xff]
        %v255 = vld [vmem:[%s179 + $0x190] sm:$0xff]
        %v256 = vld [vmem:[%s179 + $0x198] sm:$0xff]
        %v257 = vld [vmem:[%s179 + $0x1a0] sm:$0xff]
        %v258 = vld [vmem:[%s179 + $0x1a8] sm:$0xff]
        %v259 = vld [vmem:[%s179 + $0x1b0] sm:$0xff]
        %v260 = vld [vmem:[%s179 + $0x1b8] sm:$0xff]
        %v261 = vld [vmem:[%s179 + $0x1c0] sm:$0xff]
        %v262 = vld [vmem:[%s179 + $0x1c8] sm:$0xff]
        %v263 = vld [vmem:[%s179 + $0x1d0] sm:$0xff]
        %v264 = vld [vmem:[%s179 + $0x1d8] sm:$0xff]
        %v265 = vld [vmem:[%s179 + $0x1e0] sm:$0xff]
        %v266 = vld [vmem:[%s179 + $0x1e8] sm:$0xff]
        %v267 = vld [vmem:[%s179 + $0x1f0] sm:$0xff]
        %v268 = vld [vmem:[%s179 + $0x1f8] sm:$0xff]
        %v269 = vld [vmem:[%s179 + $0x200] sm:$0xff]
        %v270 = vld [vmem:[%s179 + $0x208] sm:$0xff]
        %v271 = vld [vmem:[%s179 + $0x210] sm:$0xff]
        %v272 = vld [vmem:[%s179 + $0x218] sm:$0xff]
        %v273 = vld [vmem:[%s179 + $0x220] sm:$0xff]
        %v274 = vld [vmem:[%s179 + $0x228] sm:$0xff]
        %v275 = vld [vmem:[%s179 + $0x230] sm:$0xff]
        %v276 = vld [vmem:[%s179 + $0x238] sm:$0xff]
        %v277 = vld [vmem:[%s179 + $0x240] sm:$0xff]
        %v278 = vld [vmem:[%s179 + $0x248] sm:$0xff]
        %v279 = vld [vmem:[%s179 + $0x250] sm:$0xff]
        %v280 = vld [vmem:[%s179 + $0x258] sm:$0xff]
        %v281 = vld [vmem:[%s179 + $0x260] sm:$0xff]
        %v282 = vld [vmem:[%s179 + $0x268] sm:$0xff]
        %v283 = vld [vmem:[%s179 + $0x270] sm:$0xff]
        %v284 = vld [vmem:[%s179 + $0x278] sm:$0xff]
        %v285 = vld [vmem:[%s179 + $0x280] sm:$0xff]
        %v286 = vld [vmem:[%s179 + $0x288] sm:$0xff]
        %v287 = vld [vmem:[%s179 + $0x290] sm:$0xff]
        %v288 = vld [vmem:[%s179 + $0x298] sm:$0xff]
        %v289 = vld [vmem:[%s179 + $0x2a0] sm:$0xff]
        %v290 = vld [vmem:[%s179 + $0x2a8] sm:$0xff]
        %v291 = vld [vmem:[%s179 + $0x2b0] sm:$0xff]
        %v292 = vld [vmem:[%s179 + $0x2b8] sm:$0xff]
        %v293 = vld [vmem:[%s179 + $0x2c0] sm:$0xff]
        %v294 = vld [vmem:[%s179 + $0x2c8] sm:$0xff]
        %v295 = vld [vmem:[%s179 + $0x2d0] sm:$0xff]
        %v296 = vld [vmem:[%s179 + $0x2d8] sm:$0xff]
        %v297 = vld [vmem:[%s179 + $0x2e0] sm:$0xff]
        %v298 = vld [vmem:[%s179 + $0x2e8] sm:$0xff]
        %v299 = vld [vmem:[%s179 + $0x2f0] sm:$0xff]
        %v300 = vld [vmem:[%s179 + $0x2f8] sm:$0xff]
        %v301 = vld [vmem:[%s179 + $0x300] sm:$0xff]
        %v302 = vld [vmem:[%s179 + $0x308] sm:$0xff]
        %v303 = vld [vmem:[%s179 + $0x310] sm:$0xff]
        %v304 = vld [vmem:[%s179 + $0x318] sm:$0xff]
        %v305 = vld [vmem:[%s179 + $0x320] sm:$0xff]
        %v306 = vld [vmem:[%s179 + $0x328] sm:$0xff]
        %v307 = vld [vmem:[%s179 + $0x330] sm:$0xff]
        %v308 = vld [vmem:[%s179 + $0x338] sm:$0xff]
        %v309 = vld [vmem:[%s179 + $0x340] sm:$0xff]
        %v310 = vld [vmem:[%s179 + $0x348] sm:$0xff]
        %v311 = vld [vmem:[%s179 + $0x350] sm:$0xff]
        %v312 = vld [vmem:[%s179 + $0x358] sm:$0xff]
        %v313 = vld [vmem:[%s179 + $0x360] sm:$0xff]
        %v314 = vld [vmem:[%s179 + $0x368] sm:$0xff]
        %v315 = vld [vmem:[%s179 + $0x370] sm:$0xff]
        %v316 = vld [vmem:[%s179 + $0x378] sm:$0xff]
        %v317 = vld [vmem:[%s179 + $0x380] sm:$0xff]
        %v318 = vld [vmem:[%s179 + $0x388] sm:$0xff]
        %v319 = vld [vmem:[%s179 + $0x390] sm:$0xff]
        %v320 = vld [vmem:[%s179 + $0x398] sm:$0xff]
        %v321 = vld [vmem:[%s179 + $0x3a0] sm:$0xff]
        %v322 = vld [vmem:[%s179 + $0x3a8] sm:$0xff]
        %v323 = vld [vmem:[%s179 + $0x3b0] sm:$0xff]
        %v324 = vld [vmem:[%s179 + $0x3b8] sm:$0xff]
        %v325 = vld [vmem:[%s179 + $0x3c0] sm:$0xff]
        %v326 = vld [vmem:[%s179 + $0x3c8] sm:$0xff]
        %v327 = vld [vmem:[%s179 + $0x3d0] sm:$0xff]
        %v328 = vld [vmem:[%s179 + $0x3d8] sm:$0xff]
        %v329 = vld [vmem:[%s179 + $0x3e0] sm:$0xff]
        %v330 = vld [vmem:[%s179 + $0x3e8] sm:$0xff]
        %v331 = vld [vmem:[%s179 + $0x3f0] sm:$0xff]
        %v332 = vld [vmem:[%s179 + $0x3f8] sm:$0xff]
        %v335 = vunpack.c.l.b16 %v203
        %v336 = vunpack.c.h.b16 %v203
        %v337 = vunpack.c.l.b16 %v204
        %v338 = vunpack.c.h.b16 %v204
        %v339 = vpack.c.b16 %v335, %v335
        %v340 = vpack.c.b16 %v336, %v336
        %v341 = vpack.c.b16 %v337, %v337
        %v342 = vpack.c.b16 %v338, %v338
        %v475 = vunpack.c.l.b16 %v205
        %v476 = vunpack.c.h.b16 %v205
        %v477 = vunpack.c.l.b16 %v206
        %v478 = vunpack.c.h.b16 %v206
        %v479 = vunpack.c.l.b16 %v207
        %v480 = vunpack.c.h.b16 %v207
        %v481 = vunpack.c.l.b16 %v208
        %v482 = vunpack.c.h.b16 %v208
        %v483 = vunpack.c.l.b16 %v209
        %v484 = vunpack.c.h.b16 %v209
        %v485 = vunpack.c.l.b16 %v210
        %v486 = vunpack.c.h.b16 %v210
        %v487 = vunpack.c.l.b16 %v211
        %v488 = vunpack.c.h.b16 %v211
        %v489 = vunpack.c.l.b16 %v212
        %v490 = vunpack.c.h.b16 %v212
        %v491 = vunpack.c.l.b16 %v213
        %v492 = vunpack.c.h.b16 %v213
        %v493 = vunpack.c.l.b16 %v214
        %v494 = vunpack.c.h.b16 %v214
        %v495 = vunpack.c.l.b16 %v215
        %v496 = vunpack.c.h.b16 %v215
        %v497 = vunpack.c.l.b16 %v216
        %v498 = vunpack.c.h.b16 %v216
        %v499 = vunpack.c.l.b16 %v217
        %v500 = vunpack.c.h.b16 %v217
        %v501 = vunpack.c.l.b16 %v218
        %v502 = vunpack.c.h.b16 %v218
        %v503 = vunpack.c.l.b16 %v219
        %v504 = vunpack.c.h.b16 %v219
        %v505 = vunpack.c.l.b16 %v220
        %v506 = vunpack.c.h.b16 %v220
        %v507 = vunpack.c.l.b16 %v221
        %v508 = vunpack.c.h.b16 %v221
        %v509 = vunpack.c.l.b16 %v222
        %v510 = vunpack.c.h.b16 %v222
        %v511 = vunpack.c.l.b16 %v223
        %v512 = vunpack.c.h.b16 %v223
        %v513 = vunpack.c.l.b16 %v224
        %v514 = vunpack.c.h.b16 %v224
        %v515 = vunpack.c.l.b16 %v225
        %v516 = vunpack.c.h.b16 %v225
        %v517 = vunpack.c.l.b16 %v226
        %v518 = vunpack.c.h.b16 %v226
        %v519 = vunpack.c.l.b16 %v227
        %v520 = vunpack.c.h.b16 %v227
        %v521 = vunpack.c.l.b16 %v228
        %v522 = vunpack.c.h.b16 %v228
        %v523 = vunpack.c.l.b16 %v229
        %v524 = vunpack.c.h.b16 %v229
        %v525 = vunpack.c.l.b16 %v230
        %v526 = vunpack.c.h.b16 %v230
        %v527 = vunpack.c.l.b16 %v231
        %v528 = vunpack.c.h.b16 %v231
        %v529 = vunpack.c.l.b16 %v232
        %v530 = vunpack.c.h.b16 %v232
        %v531 = vunpack.c.l.b16 %v233
        %v532 = vunpack.c.h.b16 %v233
        %v533 = vunpack.c.l.b16 %v234
        %v534 = vunpack.c.h.b16 %v234
        %v535 = vunpack.c.l.b16 %v235
        %v536 = vunpack.c.h.b16 %v235
        %v537 = vunpack.c.l.b16 %v236
        %v538 = vunpack.c.h.b16 %v236
        %v539 = vunpack.c.l.b16 %v237
        %v540 = vunpack.c.h.b16 %v237
        %v541 = vunpack.c.l.b16 %v238
        %v542 = vunpack.c.h.b16 %v238
        %v543 = vunpack.c.l.b16 %v239
        %v544 = vunpack.c.h.b16 %v239
        %v545 = vunpack.c.l.b16 %v240
        %v546 = vunpack.c.h.b16 %v240
        %v547 = vunpack.c.l.b16 %v241
        %v548 = vunpack.c.h.b16 %v241
        %v549 = vunpack.c.l.b16 %v242
        %v550 = vunpack.c.h.b16 %v242
        %v551 = vunpack.c.l.b16 %v243
        %v552 = vunpack.c.h.b16 %v243
        %v553 = vunpack.c.l.b16 %v244
        %v554 = vunpack.c.h.b16 %v244
        %v555 = vunpack.c.l.b16 %v245
        %v556 = vunpack.c.h.b16 %v245
        %v557 = vunpack.c.l.b16 %v246
        %v558 = vunpack.c.h.b16 %v246
        %v559 = vunpack.c.l.b16 %v247
        %v560 = vunpack.c.h.b16 %v247
        %v561 = vunpack.c.l.b16 %v248
        %v562 = vunpack.c.h.b16 %v248
        %v563 = vunpack.c.l.b16 %v249
        %v564 = vunpack.c.h.b16 %v249
        %v565 = vunpack.c.l.b16 %v250
        %v566 = vunpack.c.h.b16 %v250
        %v567 = vunpack.c.l.b16 %v251
        %v568 = vunpack.c.h.b16 %v251
        %v569 = vunpack.c.l.b16 %v252
        %v570 = vunpack.c.h.b16 %v252
        %v571 = vunpack.c.l.b16 %v253
        %v572 = vunpack.c.h.b16 %v253
        %v573 = vunpack.c.l.b16 %v254
        %v574 = vunpack.c.h.b16 %v254
        %v575 = vunpack.c.l.b16 %v255
        %v576 = vunpack.c.h.b16 %v255
        %v577 = vunpack.c.l.b16 %v256
        %v578 = vunpack.c.h.b16 %v256
        %v579 = vunpack.c.l.b16 %v257
        %v580 = vunpack.c.h.b16 %v257
        %v581 = vunpack.c.l.b16 %v258
        %v582 = vunpack.c.h.b16 %v258
        %v583 = vunpack.c.l.b16 %v259
        %v584 = vunpack.c.h.b16 %v259
        %v585 = vunpack.c.l.b16 %v260
        %v586 = vunpack.c.h.b16 %v260
        %v587 = vunpack.c.l.b16 %v261
        %v588 = vunpack.c.h.b16 %v261
        %v589 = vunpack.c.l.b16 %v262
        %v590 = vunpack.c.h.b16 %v262
        %v591 = vunpack.c.l.b16 %v263
        %v592 = vunpack.c.h.b16 %v263
        %v593 = vunpack.c.l.b16 %v264
        %v594 = vunpack.c.h.b16 %v264
        %v595 = vunpack.c.l.b16 %v265
        %v596 = vunpack.c.h.b16 %v265
        %v597 = vunpack.c.l.b16 %v266
        %v598 = vunpack.c.h.b16 %v266
        %v599 = vunpack.c.l.b16 %v267
        %v600 = vunpack.c.h.b16 %v267
        %v601 = vunpack.c.l.b16 %v268
        %v602 = vunpack.c.h.b16 %v268
        %v603 = vunpack.c.l.b16 %v269
        %v604 = vunpack.c.h.b16 %v269
        %v605 = vunpack.c.l.b16 %v270
        %v606 = vunpack.c.h.b16 %v270
        %v607 = vunpack.c.l.b16 %v271
        %v608 = vunpack.c.h.b16 %v271
        %v609 = vunpack.c.l.b16 %v272
        %v610 = vunpack.c.h.b16 %v272
        %v611 = vunpack.c.l.b16 %v273
        %v612 = vunpack.c.h.b16 %v273
        %v613 = vunpack.c.l.b16 %v274
        %v614 = vunpack.c.h.b16 %v274
        %v615 = vunpack.c.l.b16 %v275
        %v616 = vunpack.c.h.b16 %v275
        %v617 = vunpack.c.l.b16 %v276
        %v618 = vunpack.c.h.b16 %v276
        %v619 = vunpack.c.l.b16 %v277
        %v620 = vunpack.c.h.b16 %v277
        %v621 = vunpack.c.l.b16 %v278
        %v622 = vunpack.c.h.b16 %v278
        %v623 = vunpack.c.l.b16 %v279
        %v624 = vunpack.c.h.b16 %v279
        %v625 = vunpack.c.l.b16 %v280
        %v626 = vunpack.c.h.b16 %v280
        %v627 = vunpack.c.l.b16 %v281
        %v628 = vunpack.c.h.b16 %v281
        %v629 = vunpack.c.l.b16 %v282
        %v630 = vunpack.c.h.b16 %v282
        %v631 = vunpack.c.l.b16 %v283
        %v632 = vunpack.c.h.b16 %v283
        %v633 = vunpack.c.l.b16 %v284
        %v634 = vunpack.c.h.b16 %v284
        %v635 = vunpack.c.l.b16 %v285
        %v636 = vunpack.c.h.b16 %v285
        %v637 = vunpack.c.l.b16 %v286
        %v638 = vunpack.c.h.b16 %v286
        %v639 = vunpack.c.l.b16 %v287
        %v640 = vunpack.c.h.b16 %v287
        %v641 = vunpack.c.l.b16 %v288
        %v642 = vunpack.c.h.b16 %v288
        %v643 = vunpack.c.l.b16 %v289
        %v644 = vunpack.c.h.b16 %v289
        %v645 = vunpack.c.l.b16 %v290
        %v646 = vunpack.c.h.b16 %v290
        %v647 = vunpack.c.l.b16 %v291
        %v648 = vunpack.c.h.b16 %v291
        %v649 = vunpack.c.l.b16 %v292
        %v650 = vunpack.c.h.b16 %v292
        %v651 = vunpack.c.l.b16 %v293
        %v652 = vunpack.c.h.b16 %v293
        %v653 = vunpack.c.l.b16 %v294
        %v654 = vunpack.c.h.b16 %v294
        %v655 = vunpack.c.l.b16 %v295
        %v656 = vunpack.c.h.b16 %v295
        %v657 = vunpack.c.l.b16 %v296
        %v658 = vunpack.c.h.b16 %v296
        %v659 = vunpack.c.l.b16 %v297
        %v660 = vunpack.c.h.b16 %v297
        %v661 = vunpack.c.l.b16 %v298
        %v662 = vunpack.c.h.b16 %v298
        %v663 = vunpack.c.l.b16 %v299
        %v664 = vunpack.c.h.b16 %v299
        %v665 = vunpack.c.l.b16 %v300
        %v666 = vunpack.c.h.b16 %v300
        %v667 = vunpack.c.l.b16 %v301
        %v668 = vunpack.c.h.b16 %v301
        %v669 = vunpack.c.l.b16 %v302
        %v670 = vunpack.c.h.b16 %v302
        %v671 = vunpack.c.l.b16 %v303
        %v672 = vunpack.c.h.b16 %v303
        %v673 = vunpack.c.l.b16 %v304
        %v674 = vunpack.c.h.b16 %v304
        %v675 = vunpack.c.l.b16 %v305
        %v676 = vunpack.c.h.b16 %v305
        %v677 = vunpack.c.l.b16 %v306
        %v678 = vunpack.c.h.b16 %v306
        %v679 = vunpack.c.l.b16 %v307
        %v680 = vunpack.c.h.b16 %v307
        %v681 = vunpack.c.l.b16 %v308
        %v682 = vunpack.c.h.b16 %v308
        %v683 = vunpack.c.l.b16 %v309
        %v684 = vunpack.c.h.b16 %v309
        %v685 = vunpack.c.l.b16 %v310
        %v686 = vunpack.c.h.b16 %v310
        %v687 = vunpack.c.l.b16 %v311
        %v688 = vunpack.c.h.b16 %v311
        %v689 = vunpack.c.l.b16 %v312
        %v690 = vunpack.c.h.b16 %v312
        %v691 = vunpack.c.l.b16 %v313
        %v692 = vunpack.c.h.b16 %v313
        %v693 = vunpack.c.l.b16 %v314
        %v694 = vunpack.c.h.b16 %v314
        %v695 = vunpack.c.l.b16 %v315
        %v696 = vunpack.c.h.b16 %v315
        %v697 = vunpack.c.l.b16 %v316
        %v698 = vunpack.c.h.b16 %v316
        %v699 = vunpack.c.l.b16 %v317
        %v700 = vunpack.c.h.b16 %v317
        %v701 = vunpack.c.l.b16 %v318
        %v702 = vunpack.c.h.b16 %v318
        %v703 = vunpack.c.l.b16 %v319
        %v704 = vunpack.c.h.b16 %v319
        %v705 = vunpack.c.l.b16 %v320
        %v706 = vunpack.c.h.b16 %v320
        %v707 = vunpack.c.l.b16 %v321
        %v708 = vunpack.c.h.b16 %v321
        %v709 = vunpack.c.l.b16 %v322
        %v710 = vunpack.c.h.b16 %v322
        %v711 = vunpack.c.l.b16 %v323
        %v712 = vunpack.c.h.b16 %v323
        %v713 = vunpack.c.l.b16 %v324
        %v714 = vunpack.c.h.b16 %v324
        %v715 = vunpack.c.l.b16 %v325
        %v716 = vunpack.c.h.b16 %v325
        %v717 = vunpack.c.l.b16 %v326
        %v718 = vunpack.c.h.b16 %v326
        %v719 = vunpack.c.l.b16 %v327
        %v720 = vunpack.c.h.b16 %v327
        %v721 = vunpack.c.l.b16 %v328
        %v722 = vunpack.c.h.b16 %v328
        %v723 = vunpack.c.l.b16 %v329
        %v724 = vunpack.c.h.b16 %v329
        %v725 = vunpack.c.l.b16 %v330
        %v726 = vunpack.c.h.b16 %v330
        %v727 = vunpack.c.l.b16 %v331
        %v728 = vunpack.c.h.b16 %v331
        %v729 = vunpack.c.l.b16 %v332
        %v730 = vunpack.c.h.b16 %v332
        %v731 = vpack.c.b16 %v479, %v475
        %v732 = vpack.c.b16 %v480, %v476
        %v733 = vpack.c.b16 %v481, %v477
        %v734 = vpack.c.b16 %v482, %v478
        %v735 = vpack.c.b16 %v487, %v483
        %v736 = vpack.c.b16 %v488, %v484
        %v737 = vpack.c.b16 %v489, %v485
        %v738 = vpack.c.b16 %v490, %v486
        %v739 = vpack.c.b16 %v495, %v491
        %v740 = vpack.c.b16 %v496, %v492
        %v741 = vpack.c.b16 %v497, %v493
        %v742 = vpack.c.b16 %v498, %v494
        %v743 = vpack.c.b16 %v503, %v499
        %v744 = vpack.c.b16 %v504, %v500
        %v745 = vpack.c.b16 %v505, %v501
        %v746 = vpack.c.b16 %v506, %v502
        %v747 = vpack.c.b16 %v511, %v507
        %v748 = vpack.c.b16 %v512, %v508
        %v749 = vpack.c.b16 %v513, %v509
        %v750 = vpack.c.b16 %v514, %v510
        %v751 = vpack.c.b16 %v519, %v515
        %v752 = vpack.c.b16 %v520, %v516
        %v753 = vpack.c.b16 %v521, %v517
        %v754 = vpack.c.b16 %v522, %v518
        %v755 = vpack.c.b16 %v527, %v523
        %v756 = vpack.c.b16 %v528, %v524
        %v757 = vpack.c.b16 %v529, %v525
        %v758 = vpack.c.b16 %v530, %v526
        %v759 = vpack.c.b16 %v535, %v531
        %v760 = vpack.c.b16 %v536, %v532
        %v761 = vpack.c.b16 %v537, %v533
        %v762 = vpack.c.b16 %v538, %v534
        %v763 = vpack.c.b16 %v543, %v539
        %v764 = vpack.c.b16 %v544, %v540
        %v765 = vpack.c.b16 %v545, %v541
        %v766 = vpack.c.b16 %v546, %v542
        %v767 = vpack.c.b16 %v551, %v547
        %v768 = vpack.c.b16 %v552, %v548
        %v769 = vpack.c.b16 %v553, %v549
        %v770 = vpack.c.b16 %v554, %v550
        %v771 = vpack.c.b16 %v559, %v555
        %v772 = vpack.c.b16 %v560, %v556
        %v773 = vpack.c.b16 %v561, %v557
        %v774 = vpack.c.b16 %v562, %v558
        %v775 = vpack.c.b16 %v567, %v563
        %v776 = vpack.c.b16 %v568, %v564
        %v777 = vpack.c.b16 %v569, %v565
        %v778 = vpack.c.b16 %v570, %v566
        %v779 = vpack.c.b16 %v575, %v571
        %v780 = vpack.c.b16 %v576, %v572
        %v781 = vpack.c.b16 %v577, %v573
        %v782 = vpack.c.b16 %v578, %v574
        %v783 = vpack.c.b16 %v583, %v579
        %v784 = vpack.c.b16 %v584, %v580
        %v785 = vpack.c.b16 %v585, %v581
        %v786 = vpack.c.b16 %v586, %v582
        %v787 = vpack.c.b16 %v591, %v587
        %v788 = vpack.c.b16 %v592, %v588
        %v789 = vpack.c.b16 %v593, %v589
        %v790 = vpack.c.b16 %v594, %v590
        %v791 = vpack.c.b16 %v599, %v595
        %v792 = vpack.c.b16 %v600, %v596
        %v793 = vpack.c.b16 %v601, %v597
        %v794 = vpack.c.b16 %v602, %v598
        %v795 = vpack.c.b16 %v607, %v603
        %v796 = vpack.c.b16 %v608, %v604
        %v797 = vpack.c.b16 %v609, %v605
        %v798 = vpack.c.b16 %v610, %v606
        %v799 = vpack.c.b16 %v615, %v611
        %v800 = vpack.c.b16 %v616, %v612
        %v801 = vpack.c.b16 %v617, %v613
        %v802 = vpack.c.b16 %v618, %v614
        %v803 = vpack.c.b16 %v623, %v619
        %v804 = vpack.c.b16 %v624, %v620
        %v805 = vpack.c.b16 %v625, %v621
        %v806 = vpack.c.b16 %v626, %v622
        %v807 = vpack.c.b16 %v631, %v627
        %v808 = vpack.c.b16 %v632, %v628
        %v809 = vpack.c.b16 %v633, %v629
        %v810 = vpack.c.b16 %v634, %v630
        %v811 = vpack.c.b16 %v639, %v635
        %v812 = vpack.c.b16 %v640, %v636
        %v813 = vpack.c.b16 %v641, %v637
        %v814 = vpack.c.b16 %v642, %v638
        %v815 = vpack.c.b16 %v647, %v643
        %v816 = vpack.c.b16 %v648, %v644
        %v817 = vpack.c.b16 %v649, %v645
        %v818 = vpack.c.b16 %v650, %v646
        %v819 = vpack.c.b16 %v655, %v651
        %v820 = vpack.c.b16 %v656, %v652
        %v821 = vpack.c.b16 %v657, %v653
        %v822 = vpack.c.b16 %v658, %v654
        %v823 = vpack.c.b16 %v663, %v659
        %v824 = vpack.c.b16 %v664, %v660
        %v825 = vpack.c.b16 %v665, %v661
        %v826 = vpack.c.b16 %v666, %v662
        %v827 = vpack.c.b16 %v671, %v667
        %v828 = vpack.c.b16 %v672, %v668
        %v829 = vpack.c.b16 %v673, %v669
        %v830 = vpack.c.b16 %v674, %v670
        %v831 = vpack.c.b16 %v679, %v675
        %v832 = vpack.c.b16 %v680, %v676
        %v833 = vpack.c.b16 %v681, %v677
        %v834 = vpack.c.b16 %v682, %v678
        %v835 = vpack.c.b16 %v687, %v683
        %v836 = vpack.c.b16 %v688, %v684
        %v837 = vpack.c.b16 %v689, %v685
        %v838 = vpack.c.b16 %v690, %v686
        %v839 = vpack.c.b16 %v695, %v691
        %v840 = vpack.c.b16 %v696, %v692
        %v841 = vpack.c.b16 %v697, %v693
        %v842 = vpack.c.b16 %v698, %v694
        %v843 = vpack.c.b16 %v703, %v699
        %v844 = vpack.c.b16 %v704, %v700
        %v845 = vpack.c.b16 %v705, %v701
        %v846 = vpack.c.b16 %v706, %v702
        %v847 = vpack.c.b16 %v711, %v707
        %v848 = vpack.c.b16 %v712, %v708
        %v849 = vpack.c.b16 %v713, %v709
        %v850 = vpack.c.b16 %v714, %v710
        %v851 = vpack.c.b16 %v719, %v715
        %v852 = vpack.c.b16 %v720, %v716
        %v853 = vpack.c.b16 %v721, %v717
        %v854 = vpack.c.b16 %v722, %v718
        %v855 = vpack.c.b16 %v727, %v723
        %v856 = vpack.c.b16 %v728, %v724
        %v857 = vpack.c.b16 %v729, %v725
        %v858 = vpack.c.b16 %v730, %v726
        %987 = vmatpush.bf16.msra.mxu0 %v759
        %988 = vmatpush.bf16.msra.mxu0 %v755
        %989 = vmatpush.bf16.msra.mxu0 %v751
        %990 = vmatpush.bf16.msra.mxu0 %v747
        %991 = vmatpush.bf16.msra.mxu0 %v743
        %992 = vmatpush.bf16.msra.mxu0 %v739
        %993 = vmatpush.bf16.msra.mxu0 %v735
        %994 = vmatpush.bf16.msra.mxu0 %v731
        %995 = vmatmul.bf16.gmra.mxu0 %v339
        %v996 = vpop.f32.mrf.mxu0
        %v997 = vadd.f32 0.0, %v996
        %v998 = vpop.f32.mrf.mxu0
        %999 = vdwg.mxu0
        %1000 = vmatpush.bf16.msra.mxu0 %v791
        %1001 = vmatpush.bf16.msra.mxu0 %v787
        %1002 = vmatpush.bf16.msra.mxu0 %v783
        %1003 = vmatpush.bf16.msra.mxu0 %v779
        %1004 = vmatpush.bf16.msra.mxu0 %v775
        %1005 = vmatpush.bf16.msra.mxu0 %v771
        %1006 = vmatpush.bf16.msra.mxu0 %v767
        %1007 = vmatpush.bf16.msra.mxu0 %v763
        %1008 = vmatmul.bf16.gmra.mxu0 %v340
        %v1009 = vpop.f32.mrf.mxu0
        %v1010 = vadd.f32 %v997, %v1009
        %v1011 = vpop.f32.mrf.mxu0
        %1012 = vdwg.mxu0
        %1013 = vmatpush.bf16.msra.mxu0 %v823
        %1014 = vmatpush.bf16.msra.mxu0 %v819
        %1015 = vmatpush.bf16.msra.mxu0 %v815
        %1016 = vmatpush.bf16.msra.mxu0 %v811
        %1017 = vmatpush.bf16.msra.mxu0 %v807
        %1018 = vmatpush.bf16.msra.mxu0 %v803
        %1019 = vmatpush.bf16.msra.mxu0 %v799
        %1020 = vmatpush.bf16.msra.mxu0 %v795
        %1021 = vmatmul.bf16.gmra.mxu0 %v341
        %v1022 = vpop.f32.mrf.mxu0
        %v1023 = vadd.f32 %v1010, %v1022
        %v1024 = vpop.f32.mrf.mxu0
        %1025 = vdwg.mxu0
        %1026 = vmatpush.bf16.msra.mxu0 %v855
        %1027 = vmatpush.bf16.msra.mxu0 %v851
        %1028 = vmatpush.bf16.msra.mxu0 %v847
        %1029 = vmatpush.bf16.msra.mxu0 %v843
        %1030 = vmatpush.bf16.msra.mxu0 %v839
        %1031 = vmatpush.bf16.msra.mxu0 %v835
        %1032 = vmatpush.bf16.msra.mxu0 %v831
        %1033 = vmatpush.bf16.msra.mxu0 %v827
        %1034 = vmatmul.bf16.gmra.mxu0 %v342
        %v1035 = vpop.f32.mrf.mxu0
        %v1036 = vadd.f32 %v1023, %v1035
        %v1037 = vpop.f32.mrf.mxu0
        %1038 = vdwg.mxu0
        %1039 = vmatpush.bf16.msra.mxu0 %v760
        %1040 = vmatpush.bf16.msra.mxu0 %v756
        %1041 = vmatpush.bf16.msra.mxu0 %v752
        %1042 = vmatpush.bf16.msra.mxu0 %v748
        %1043 = vmatpush.bf16.msra.mxu0 %v744
        %1044 = vmatpush.bf16.msra.mxu0 %v740
        %1045 = vmatpush.bf16.msra.mxu0 %v736
        %1046 = vmatpush.bf16.msra.mxu0 %v732
        %1047 = vmatmul.bf16.gmra.mxu0 %v339
        %v1048 = vpop.f32.mrf.mxu0
        %v1049 = vadd.f32 0.0, %v1048
        %v1050 = vpop.f32.mrf.mxu0
        %1051 = vdwg.mxu0
        %1052 = vmatpush.bf16.msra.mxu0 %v792
        %1053 = vmatpush.bf16.msra.mxu0 %v788
        %1054 = vmatpush.bf16.msra.mxu0 %v784
        %1055 = vmatpush.bf16.msra.mxu0 %v780
        %1056 = vmatpush.bf16.msra.mxu0 %v776
        %1057 = vmatpush.bf16.msra.mxu0 %v772
        %1058 = vmatpush.bf16.msra.mxu0 %v768
        %1059 = vmatpush.bf16.msra.mxu0 %v764
        %1060 = vmatmul.bf16.gmra.mxu0 %v340
        %v1061 = vpop.f32.mrf.mxu0
        %v1062 = vadd.f32 %v1049, %v1061
        %v1063 = vpop.f32.mrf.mxu0
        %1064 = vdwg.mxu0
        %1065 = vmatpush.bf16.msra.mxu0 %v824
        %1066 = vmatpush.bf16.msra.mxu0 %v820
        %1067 = vmatpush.bf16.msra.mxu0 %v816
        %1068 = vmatpush.bf16.msra.mxu0 %v812
        %1069 = vmatpush.bf16.msra.mxu0 %v808
        %1070 = vmatpush.bf16.msra.mxu0 %v804
        %1071 = vmatpush.bf16.msra.mxu0 %v800
        %1072 = vmatpush.bf16.msra.mxu0 %v796
        %1073 = vmatmul.bf16.gmra.mxu0 %v341
        %v1074 = vpop.f32.mrf.mxu0
        %v1075 = vadd.f32 %v1062, %v1074
        %v1076 = vpop.f32.mrf.mxu0
        %1077 = vdwg.mxu0
        %1078 = vmatpush.bf16.msra.mxu0 %v856
        %1079 = vmatpush.bf16.msra.mxu0 %v852
        %1080 = vmatpush.bf16.msra.mxu0 %v848
        %1081 = vmatpush.bf16.msra.mxu0 %v844
        %1082 = vmatpush.bf16.msra.mxu0 %v840
        %1083 = vmatpush.bf16.msra.mxu0 %v836
        %1084 = vmatpush.bf16.msra.mxu0 %v832
        %1085 = vmatpush.bf16.msra.mxu0 %v828
        %1086 = vmatmul.bf16.gmra.mxu0 %v342
        %v1087 = vpop.f32.mrf.mxu0
        %v1088 = vadd.f32 %v1075, %v1087
        %v1089 = vpop.f32.mrf.mxu0
        %1090 = vdwg.mxu0
        %1091 = vmatpush.bf16.msra.mxu0 %v761
        %1092 = vmatpush.bf16.msra.mxu0 %v757
        %1093 = vmatpush.bf16.msra.mxu0 %v753
        %1094 = vmatpush.bf16.msra.mxu0 %v749
        %1095 = vmatpush.bf16.msra.mxu0 %v745
        %1096 = vmatpush.bf16.msra.mxu0 %v741
        %1097 = vmatpush.bf16.msra.mxu0 %v737
        %1098 = vmatpush.bf16.msra.mxu0 %v733
        %1099 = vmatmul.bf16.gmra.mxu0 %v339
        %v1100 = vpop.f32.mrf.mxu0
        %v1101 = vadd.f32 0.0, %v1100
        %v1102 = vpop.f32.mrf.mxu0
        %1103 = vdwg.mxu0
        %1104 = vmatpush.bf16.msra.mxu0 %v793
        %1105 = vmatpush.bf16.msra.mxu0 %v789
        %1106 = vmatpush.bf16.msra.mxu0 %v785
        %1107 = vmatpush.bf16.msra.mxu0 %v781
        %1108 = vmatpush.bf16.msra.mxu0 %v777
        %1109 = vmatpush.bf16.msra.mxu0 %v773
        %1110 = vmatpush.bf16.msra.mxu0 %v769
        %1111 = vmatpush.bf16.msra.mxu0 %v765
        %1112 = vmatmul.bf16.gmra.mxu0 %v340
        %v1113 = vpop.f32.mrf.mxu0
        %v1114 = vadd.f32 %v1101, %v1113
        %v1115 = vpop.f32.mrf.mxu0
        %1116 = vdwg.mxu0
        %1117 = vmatpush.bf16.msra.mxu0 %v825
        %1118 = vmatpush.bf16.msra.mxu0 %v821
        %1119 = vmatpush.bf16.msra.mxu0 %v817
        %1120 = vmatpush.bf16.msra.mxu0 %v813
        %1121 = vmatpush.bf16.msra.mxu0 %v809
        %1122 = vmatpush.bf16.msra.mxu0 %v805
        %1123 = vmatpush.bf16.msra.mxu0 %v801
        %1124 = vmatpush.bf16.msra.mxu0 %v797
        %1125 = vmatmul.bf16.gmra.mxu0 %v341
        %v1126 = vpop.f32.mrf.mxu0
        %v1127 = vadd.f32 %v1114, %v1126
        %v1128 = vpop.f32.mrf.mxu0
        %1129 = vdwg.mxu0
        %1130 = vmatpush.bf16.msra.mxu0 %v857
        %1131 = vmatpush.bf16.msra.mxu0 %v853
        %1132 = vmatpush.bf16.msra.mxu0 %v849
        %1133 = vmatpush.bf16.msra.mxu0 %v845
        %1134 = vmatpush.bf16.msra.mxu0 %v841
        %1135 = vmatpush.bf16.msra.mxu0 %v837
        %1136 = vmatpush.bf16.msra.mxu0 %v833
        %1137 = vmatpush.bf16.msra.mxu0 %v829
        %1138 = vmatmul.bf16.gmra.mxu0 %v342
        %v1139 = vpop.f32.mrf.mxu0
        %v1140 = vadd.f32 %v1127, %v1139
        %v1141 = vpop.f32.mrf.mxu0
        %1142 = vdwg.mxu0
        %1143 = vmatpush.bf16.msra.mxu0 %v762
        %1144 = vmatpush.bf16.msra.mxu0 %v758
        %1145 = vmatpush.bf16.msra.mxu0 %v754
        %1146 = vmatpush.bf16.msra.mxu0 %v750
        %1147 = vmatpush.bf16.msra.mxu0 %v746
        %1148 = vmatpush.bf16.msra.mxu0 %v742
        %1149 = vmatpush.bf16.msra.mxu0 %v738
        %1150 = vmatpush.bf16.msra.mxu0 %v734
        %1151 = vmatmul.bf16.gmra.mxu0 %v339
        %v1152 = vpop.f32.mrf.mxu0
        %v1153 = vadd.f32 0.0, %v1152
        %v1154 = vpop.f32.mrf.mxu0
        %1155 = vdwg.mxu0
        %1156 = vmatpush.bf16.msra.mxu0 %v794
        %1157 = vmatpush.bf16.msra.mxu0 %v790
        %1158 = vmatpush.bf16.msra.mxu0 %v786
        %1159 = vmatpush.bf16.msra.mxu0 %v782
        %1160 = vmatpush.bf16.msra.mxu0 %v778
        %1161 = vmatpush.bf16.msra.mxu0 %v774
        %1162 = vmatpush.bf16.msra.mxu0 %v770
        %1163 = vmatpush.bf16.msra.mxu0 %v766
        %1164 = vmatmul.bf16.gmra.mxu0 %v340
        %v1165 = vpop.f32.mrf.mxu0
        %v1166 = vadd.f32 %v1153, %v1165
        %v1167 = vpop.f32.mrf.mxu0
        %1168 = vdwg.mxu0
        %1169 = vmatpush.bf16.msra.mxu0 %v826
        %1170 = vmatpush.bf16.msra.mxu0 %v822
        %1171 = vmatpush.bf16.msra.mxu0 %v818
        %1172 = vmatpush.bf16.msra.mxu0 %v814
        %1173 = vmatpush.bf16.msra.mxu0 %v810
        %1174 = vmatpush.bf16.msra.mxu0 %v806
        %1175 = vmatpush.bf16.msra.mxu0 %v802
        %1176 = vmatpush.bf16.msra.mxu0 %v798
        %1177 = vmatmul.bf16.gmra.mxu0 %v341
        %v1178 = vpop.f32.mrf.mxu0
        %v1179 = vadd.f32 %v1166, %v1178
        %v1180 = vpop.f32.mrf.mxu0
        %1181 = vdwg.mxu0
        %1182 = vmatpush.bf16.msra.mxu0 %v858
        %1183 = vmatpush.bf16.msra.mxu0 %v854
        %1184 = vmatpush.bf16.msra.mxu0 %v850
        %1185 = vmatpush.bf16.msra.mxu0 %v846
        %1186 = vmatpush.bf16.msra.mxu0 %v842
        %1187 = vmatpush.bf16.msra.mxu0 %v838
        %1188 = vmatpush.bf16.msra.mxu0 %v834
        %1189 = vmatpush.bf16.msra.mxu0 %v830
        %1190 = vmatmul.bf16.gmra.mxu0 %v342
        %v1191 = vpop.f32.mrf.mxu0
        %v1192 = vadd.f32 %v1179, %v1191
        %v1193 = vpop.f32.mrf.mxu0
        %1194 = vdwg.mxu0
        %v1195 = vpack.c.bf16 %v1088, %v1036
        %v1196 = vpack.c.bf16 %v1192, %v1140
        %1197 = vst [vmem:[%s200] sm:$0xff] %v1195
        %1198 = vst [vmem:[%s200 + $0x8] sm:$0xff] %v1196
        %s1199 = sand.u32 %s94, 1
        %s1200 = scalar_lea.sflag [#allocation4], %s1199
        %s1201 = sand.u32 %s94, 1
        %s1202 = smul.addr %s1201, 16
        %s1203 = scalar_lea.vmem [#allocation7], %s1202
        // Predicated region
        $region37: #{tpu_custom_call.1} parent=27 // pred_check
          %p1204 = pneg %p104
        $region38: #{tpu_custom_call.1} parent=27 // pred_check_branch
          %1206 = sbr.rel (%p1204) target = $region40
        $region39: #{tpu_custom_call.1} parent=27 // pred_region
          %s1207 = smul.u32 4, %s25
          %1209 = vsyncadd %s1200, 0
          %s1210 = smul.addr %s24, 32
          %s1211 = sadd.s32 %s1207, %s1210
          %s1212 = smul.addr %s1211, 4
          %s1213 = scalar_lea.hbm %s2, %s1212
          %s1215 = sshll.u32 %s1203, 4
          %s1216 = int_to_ptr.vmem [resolvable:$true] %s1215
          %s1217 = sshll.u32 %s1213, 4
          %s1218 = int_to_ptr.hbm [resolvable:$true] %s1217
          %1220 = dma.vmem_to_hbm [thread:$0]  %s1216, 256, %s1218, %s1200
        $region40: #{tpu_custom_call.1} parent=27 // pred_fallthru
          _
      $region28: #{tpu_custom_call.1} parent=5 // pred_fallthru
        _
      %p1221 = scmp.le.s32.totalorder 2, %s15
      // Predicated region
      $region41: #{tpu_custom_call.1} parent=5 // pred_check
        %p1222 = pneg %p1221
      $region42: #{tpu_custom_call.1} parent=5 // pred_check_branch
        %1224 = sbr.rel (%p1222) target = $region44
      $region43: #{tpu_custom_call.1} parent=5 // pred_region
        %s1225 = ssub.s32 %s15, 2
        // Predicated region
        $region45: #{tpu_custom_call.1} parent=43 // pred_check
          %p1226 = pneg %p110
        $region46: #{tpu_custom_call.1} parent=43 // pred_check_branch
          %1228 = sbr.rel (%p1226) target = $region48
        $region47: #{tpu_custom_call.1} parent=43 // pred_region
          %s1229 = sand.u32 %s95, 1
          %s1230 = scalar_lea.sflag [#allocation4], %s1229
          %s1231 = sand.u32 %s95, 1
          %s1232 = smul.addr %s1231, 16
          %s1233 = scalar_lea.vmem [#allocation7], %s1232
          %1235 = dma.done %s1230, 256
        $region48: #{tpu_custom_call.1} parent=43 // pred_fallthru
          _
      $region44: #{tpu_custom_call.1} parent=5 // pred_fallthru
        _
    $region6: #{tpu_custom_call.1} parent=1 // loop_footer
      %s19 = sadd.s32 1, %s15
    $region7: #{tpu_custom_call.1} parent=1 // loop_footer_branch
      %14 = sbr.rel target = $region3
    $region8: #{tpu_custom_call.1} parent=1 // loop_exit
      _
    %1236 = vsyncpa [#allocation3], 1
    %s1237 = scalar_lea.sflag [#allocation3], 1
    %1238 = vsyncpa %s1237, 1
    %1239 = vsyncpa [#allocation6], 1
    %s1240 = scalar_lea.sflag [#allocation6], 1
    %1241 = vsyncpa %s1240, 1
    %1242 = vsyncpa [#allocation4], 1
    %s1243 = scalar_lea.sflag [#allocation4], 1
    %1244 = vsyncpa %s1243, 1

</llo_original>
